<compile_context>
chip_gen: v7x
topology: tpu7x:2x2x1
jax: 0.10.0
libtpu: 0.0.40
codegen_flags: <defaults>
</compile_context>

<pallas_src>
import jax
import jax.numpy as jnp
from jax import lax
from jax.experimental import pallas as pl
from jax.experimental.pallas import tpu as pltpu

LEVEL_LIST = [8, 8, 8, 6, 5]
CODEBOOK_DIM = len(LEVEL_LIST)
CP = 128  # padded codebook width (lane dimension)


def _cumprod(xs):
    out, p = [], 1
    for x in xs:
        p *= x
        out.append(p)
    return out


BASIS_LIST = _cumprod([1] + LEVEL_LIST[:-1])          # [1, 8, 64, 512, 3072]
# Constant part of codes_to_indices: sum(half_width * basis).
IDX_OFFSET = float(sum((l // 2) * b for l, b in zip(LEVEL_LIST, BASIS_LIST)))


def _round_up(x, m):
    return -(-x // m) * m


def _vmem_budget():
    """Returns (tile budget bytes, scoped-vmem cap bytes) for this TPU gen."""
    cap = 64 << 20                          # conservative fallback = v7x per-TC VMEM
    try:
        info = pltpu.get_tpu_info()
        for name in ("vmem_capacity_bytes", "vmem_size_bytes", "vmem_bytes"):
            v = getattr(info, name, None)
            if v:
                cap = int(v)
                break
    except Exception:
        pass
    cap = max(cap, 48 << 20)
    limit_cap = (cap * 3) // 4              # 48 MiB on v7x, 96 MiB on v5e/v6e
    tile_budget = limit_cap - (4 << 20)     # headroom for compiler-internal scratch
    return tile_budget, limit_cap


def _fsq_kernel(x_ref, w_in_ref, b_in_ref, w_out_ref, b_out_ref,
                half_l_ref, offset_ref, basis_ref, out_ref, idx_ref):
    x = x_ref[...]                                    # (TN, D) f32

    # project_in (tan-shift already folded into the bias): MXU.
    z = jnp.dot(x, w_in_ref[...], preferred_element_type=jnp.float32) + b_in_ref[...]

    # bound + round.  Level constants are host-precomputed (1, 128) rows, so
    # the only per-step EUP op here is the tanh.
    quantized = jnp.round(jnp.tanh(z) * half_l_ref[...] - offset_ref[...])

    # project_out with 1/half_width folded into the weights -> consumes
    # `quantized` directly (no per-element divide).  Padded rows are zero.
    out_ref[...] = (
        jnp.dot(quantized, w_out_ref[...], preferred_element_type=jnp.float32)
        + b_out_ref[...])

    # codes_to_indices: (quantized + half_width) . basis
    #                 == quantized . basis + IDX_OFFSET   (exact integers in f32)
    # MXU contraction over the codebook lanes -> lane-dense (1, TN) row.
    idx = lax.dot_general(
        basis_ref[...], quantized,
        dimension_numbers=(((1,), (1,)), ((), ())),
        preferred_element_type=jnp.float32) + IDX_OFFSET
    idx_ref[...] = jnp.round(idx)[None].astype(jnp.int32)


def fsq_forward(z, w_in, b_in, w_out, b_out, *, tile_n=None):
    """z: (N, D) float32.  Returns (out (N, D) float32, indices (N,) int32)."""
    N, D = z.shape
    tile_budget, vmem_cap = _vmem_budget()

    # VMEM held by the (double-buffered) constant operands across the grid.
    weight_bytes = 2 * (2 * D * CP + 4 * CP + 2 * D) * 4

    if tile_n is None:
        # Bytes-targeted: aim for a ~4 MiB f32 z tile per grid step (keeps the
        # per-step ~0.35 us overhead and DMA startup negligible even at small
        # D), capped by what fits next to the weights in the VMEM budget.
        row_bytes = D * 4
        per_row = 4 * row_bytes + 16              # 2x double-buffered z + out (+idx)
        avail = max(1 << 20, tile_budget - weight_bytes)
        tile_n_max = max(8, (avail // per_row) // 8 * 8)
        tile_n_tgt = _round_up(pl.cdiv(4 << 20, row_bytes), 8)
        tile_n = min(tile_n_max, tile_n_tgt)

    tile_n = max(8, (tile_n // 8) * 8)
    if N >= 8:
        tile_n = min(tile_n, (N // 8) * 8)        # keep blocks 8-aligned and <= N
    else:
        tile_n = N                                 # block == full array dim

    n_tiles = pl.cdiv(N, tile_n)
    # v7x has 2 TensorCores: give the "parallel" axis >= 2 steps to shard.
    if n_tiles < 2 and tile_n > 8:
        tile_n = _round_up(max(8, tile_n // 2), 8)
        n_tiles = pl.cdiv(N, tile_n)

    # ---------------- host-side constant folding ----------------
    levels = jnp.asarray(LEVEL_LIST, jnp.float32)
    basis = jnp.asarray(BASIS_LIST, jnp.float32)
    eps = 1e-3
    half_l = (levels - 1.0) * (1.0 - eps) * 0.5
    offset = jnp.where(jnp.mod(levels, 2.0) == 0.0, 0.5, 0.0)
    shift = jnp.tan(offset / half_l)
    half_width = jnp.floor(levels * 0.5)              # == levels // 2

    pad = CP - CODEBOOK_DIM
    half_l_p = jnp.concatenate([half_l, jnp.ones((pad,), jnp.float32)])[None, :]
    offset_p = jnp.concatenate([offset, jnp.zeros((pad,), jnp.float32)])[None, :]
    basis_p = jnp.concatenate([basis, jnp.zeros((pad,), jnp.float32)])[None, :]

    # project_in: PyTorch Linear stores (out, in); we use x @ W with W=(D, CP).
    w_in_p = jnp.zeros((D, CP), jnp.float32).at[:, :CODEBOOK_DIM].set(
        w_in.T.astype(jnp.float32))
    b_in_p = jnp.zeros((1, CP), jnp.float32).at[0, :CODEBOOK_DIM].set(
        b_in.astype(jnp.float32) + shift)             # tan-shift folded in
    # project_out: (CP, D) with 1/half_width folded into the live rows.
    w_out_p = jnp.zeros((CP, D), jnp.float32).at[:CODEBOOK_DIM, :].set(
        w_out.T.astype(jnp.float32) / half_width[:, None])
    b_out_p = b_out[None, :].astype(jnp.float32)

    const = lambda shape: pl.BlockSpec(shape, lambda i: (0, 0))

    # Raise the scoped-VMEM limit above the 16/32 MiB defaults, but stay under
    # the generation-aware cap (48 MiB on v7x, 96 MiB on v5e/v6e).
    vmem_need = 4 * tile_n * D * 4 + 4 * tile_n * 4 + weight_bytes
    vmem_limit = int(min(vmem_cap, max(32 << 20, (vmem_need * 3) // 2)))

    cost = pl.CostEstimate(
        flops=4 * N * D * CP + 2 * N * CP,           # two MXU projections + idx dot
        transcendentals=N * CP,                      # tanh on the padded lanes
        bytes_accessed=8 * N * D + 4 * N + 8 * D * CP)

    out, idx = pl.pallas_call(
        _fsq_kernel,
        out_shape=(
            jax.ShapeDtypeStruct((N, D), jnp.float32),
            jax.ShapeDtypeStruct((n_tiles, 1, tile_n), jnp.int32),
        ),
        grid=(n_tiles,),
        in_specs=[
            pl.BlockSpec((tile_n, D), lambda i: (i, 0)),   # z tile
            const((D, CP)),                                # w_in
            const((1, CP)),                                # b_in (+shift)
            const((CP, D)),                                # w_out (/half_width)
            const((1, D)),                                 # b_out
            const((1, CP)),                                # half_l
            const((1, CP)),                                # offset
            const((1, CP)),                                # basis
        ],
        out_specs=(
            pl.BlockSpec((tile_n, D), lambda i: (i, 0)),
            pl.BlockSpec((1, 1, tile_n), lambda i: (i, 0, 0)),
        ),
        compiler_params=pltpu.CompilerParams(
            dimension_semantics=("parallel",),
            vmem_limit_bytes=vmem_limit),
        cost_estimate=cost,
    )(z.astype(jnp.float32), w_in_p, b_in_p, w_out_p, b_out_p,
      half_l_p, offset_p, basis_p)

    # Garbage values computed for the ragged tail of the last block are never
    # written back for `out` (partial block masked) and are sliced off for idx.
    return out, idx.reshape(-1)[:N]


def _fsq_reference(z, w_in, b_in, w_out, b_out):
    """Pure-JAX reference mirroring the PyTorch forward."""
    levels = jnp.asarray(LEVEL_LIST, jnp.float32)
    basis = jnp.cumprod(jnp.asarray([1] + LEVEL_LIST[:-1], jnp.float32))
    zc = z @ w_in.T + b_in
    eps = 1e-3
    half_l = (levels - 1.0) * (1.0 - eps) / 2.0
    offset = jnp.where(levels % 2.0 == 0.0, 0.5, 0.0)
    shift = jnp.tan(offset / half_l)
    bounded = jnp.tanh(zc + shift) * half_l - offset
    quantized = jnp.round(bounded)
    half_width = jnp.floor(levels / 2.0)
    codes = quantized / half_width
    zhat = codes * half_width + half_width
    indices = jnp.sum(zhat * basis, axis=-1).astype(jnp.int32)
    out = codes @ w_out.T + b_out
    return out, indices


if __name__ == "__main__":
    # Small shapes: batch=2, seq=8, dim=32  ->  N = 16 tokens.
    batch, seq, dim = 2, 8, 32
    N = batch * seq

    key = jax.random.PRNGKey(0)
    k_z, k_wi, k_bi, k_wo, k_bo = jax.random.split(key, 5)

    z = jax.random.normal(k_z, (N, dim), jnp.float32)
    # Deterministic synthetic parameters (PyTorch Linear shapes: (out, in)).
    w_in = jax.random.normal(k_wi, (CODEBOOK_DIM, dim), jnp.float32) * 0.2
    b_in = jax.random.normal(k_bi, (CODEBOOK_DIM,), jnp.float32) * 0.1
    w_out = jax.random.normal(k_wo, (dim, CODEBOOK_DIM), jnp.float32) * 0.2
    b_out = jax.random.normal(k_bo, (dim,), jnp.float32) * 0.1

    out, indices = jax.block_until_ready(
        jax.jit(fsq_forward)(z, w_in, b_in, w_out, b_out))

    out_ref, idx_ref = _fsq_reference(z, w_in, b_in, w_out, b_out)
    assert out.shape == (N, dim) and indices.shape == (N,)
    assert indices.dtype == jnp.int32
    assert jnp.allclose(out, out_ref, atol=1e-5, rtol=1e-5)
    assert jnp.array_equal(indices, idx_ref)

    print("KERNEL_OK")
</pallas_src>

<mosaic_0001>
module attributes {stable_mosaic.version = 11 : i64} {
  func.func @_fsq_kernel(%arg0: i32, %arg1: memref<8x32xf32, #tpu.memory_space<vmem>>, %arg2: memref<32x128xf32, #tpu.memory_space<vmem>>, %arg3: memref<1x128xf32, #tpu.memory_space<vmem>>, %arg4: memref<128x32xf32, #tpu.memory_space<vmem>>, %arg5: memref<1x32xf32, #tpu.memory_space<vmem>>, %arg6: memref<1x128xf32, #tpu.memory_space<vmem>>, %arg7: memref<1x128xf32, #tpu.memory_space<vmem>>, %arg8: memref<1x128xf32, #tpu.memory_space<vmem>>, %arg9: memref<8x32xf32, #tpu.memory_space<vmem>>, %arg10: memref<1x1x8xi32, #tpu.memory_space<vmem>>) attributes {dimension_semantics = [#tpu.dimension_semantics<parallel>], iteration_bounds = array<i64: 2>, scalar_prefetch = 0 : i64, scratch_operands = 0 : i64, tpu.core_type = #tpu.core_type<tc>, window_params = [{transform_indices = @transform_0, window_bounds = array<i64: 8, 32>}, {pipeline_mode = #tpu.pipeline_mode<synchronous>, transform_indices = @transform_1, window_bounds = array<i64: 32, 128>}, {pipeline_mode = #tpu.pipeline_mode<synchronous>, transform_indices = @transform_2, window_bounds = array<i64: 1, 128>}, {pipeline_mode = #tpu.pipeline_mode<synchronous>, transform_indices = @transform_3, window_bounds = array<i64: 128, 32>}, {pipeline_mode = #tpu.pipeline_mode<synchronous>, transform_indices = @transform_4, window_bounds = array<i64: 1, 32>}, {pipeline_mode = #tpu.pipeline_mode<synchronous>, transform_indices = @transform_5, window_bounds = array<i64: 1, 128>}, {pipeline_mode = #tpu.pipeline_mode<synchronous>, transform_indices = @transform_6, window_bounds = array<i64: 1, 128>}, {pipeline_mode = #tpu.pipeline_mode<synchronous>, transform_indices = @transform_7, window_bounds = array<i64: 1, 128>}, {transform_indices = @transform_8, window_bounds = array<i64: 8, 32>}, {transform_indices = @transform_9, window_bounds = array<i64: 1, 1, 8>}]} {
    %c0 = arith.constant 0 : index
    %c0_0 = arith.constant 0 : index
    %0 = vector.load %arg1[%c0, %c0_0] : memref<8x32xf32, #tpu.memory_space<vmem>>, vector<8x32xf32>
    %c0_1 = arith.constant 0 : index
    %c0_2 = arith.constant 0 : index
    %1 = vector.load %arg2[%c0_1, %c0_2] : memref<32x128xf32, #tpu.memory_space<vmem>>, vector<32x128xf32>
    %cst = arith.constant dense<0.000000e+00> : vector<8x128xf32>
    %2 = tpu.matmul %0, %1, %cst {dimension_numbers = #tpu.dot_dimension_numbers<[1], [0], [0], [1], [0, 0, 1, 1], [], []>} : vector<8x32xf32>, vector<32x128xf32>, vector<8x128xf32> -> vector<8x128xf32>
    %c0_3 = arith.constant 0 : index
    %c0_4 = arith.constant 0 : index
    %3 = vector.load %arg3[%c0_3, %c0_4] : memref<1x128xf32, #tpu.memory_space<vmem>>, vector<1x128xf32>
    %4 = vector.broadcast %3 : vector<1x128xf32> to vector<8x128xf32>
    %5 = arith.addf %2, %4 : vector<8x128xf32>
    %6 = math.tanh %5 : vector<8x128xf32>
    %c0_5 = arith.constant 0 : index
    %c0_6 = arith.constant 0 : index
    %7 = vector.load %arg6[%c0_5, %c0_6] : memref<1x128xf32, #tpu.memory_space<vmem>>, vector<1x128xf32>
    %8 = vector.broadcast %7 : vector<1x128xf32> to vector<8x128xf32>
    %9 = arith.mulf %6, %8 : vector<8x128xf32>
    %c0_7 = arith.constant 0 : index
    %c0_8 = arith.constant 0 : index
    %10 = vector.load %arg7[%c0_7, %c0_8] : memref<1x128xf32, #tpu.memory_space<vmem>>, vector<1x128xf32>
    %11 = vector.broadcast %10 : vector<1x128xf32> to vector<8x128xf32>
    %12 = arith.subf %9, %11 : vector<8x128xf32>
    %13 = math.roundeven %12 : vector<8x128xf32>
    %c0_9 = arith.constant 0 : index
    %c0_10 = arith.constant 0 : index
    %14 = vector.load %arg4[%c0_9, %c0_10] : memref<128x32xf32, #tpu.memory_space<vmem>>, vector<128x32xf32>
    %cst_11 = arith.constant dense<0.000000e+00> : vector<8x32xf32>
    %15 = tpu.matmul %13, %14, %cst_11 {dimension_numbers = #tpu.dot_dimension_numbers<[1], [0], [0], [1], [0, 0, 1, 1], [], []>} : vector<8x128xf32>, vector<128x32xf32>, vector<8x32xf32> -> vector<8x32xf32>
    %c0_12 = arith.constant 0 : index
    %c0_13 = arith.constant 0 : index
    %16 = vector.load %arg5[%c0_12, %c0_13] : memref<1x32xf32, #tpu.memory_space<vmem>>, vector<1x32xf32>
    %17 = vector.broadcast %16 : vector<1x32xf32> to vector<8x32xf32>
    %18 = arith.addf %15, %17 : vector<8x32xf32>
    %c0_14 = arith.constant 0 : index
    %c0_15 = arith.constant 0 : index
    %19 = vector.load %arg9[%c0_14, %c0_15] : memref<8x32xf32, #tpu.memory_space<vmem>>, vector<8x32xf32>
    tpu.vector_store %arg9[%c0_14, %c0_15], %18 {strides = array<i32>} : memref<8x32xf32, #tpu.memory_space<vmem>>, vector<8x32xf32>,
    %c0_16 = arith.constant 0 : index
    %c0_17 = arith.constant 0 : index
    %20 = vector.load %arg8[%c0_16, %c0_17] : memref<1x128xf32, #tpu.memory_space<vmem>>, vector<1x128xf32>
    %cst_18 = arith.constant dense<0.000000e+00> : vector<1x8xf32>
    %21 = tpu.matmul %20, %13, %cst_18 {dimension_numbers = #tpu.dot_dimension_numbers<[1], [1], [0], [0], [0, 0, 1, 0], [], []>} : vector<1x128xf32>, vector<8x128xf32>, vector<1x8xf32> -> vector<1x8xf32>
    %cst_19 = arith.constant 7.972000e+03 : f32
    %22 = vector.broadcast %cst_19 : f32 to vector<1x8xf32>
    %23 = arith.addf %21, %22 : vector<1x8xf32>
    %24 = math.roundeven %23 : vector<1x8xf32>
    %25 = vector.shape_cast %24 : vector<1x8xf32> to vector<1x1x8xf32>
    %26 = arith.fptosi %25 : vector<1x1x8xf32> to vector<1x1x8xi32>
    %c0_20 = arith.constant 0 : index
    %c0_21 = arith.constant 0 : index
    %c0_22 = arith.constant 0 : index
    %27 = vector.load %arg10[%c0_20, %c0_21, %c0_22] : memref<1x1x8xi32, #tpu.memory_space<vmem>>, vector<1x1x8xi32>
    tpu.vector_store %arg10[%c0_20, %c0_21, %c0_22], %26 {strides = array<i32>} : memref<1x1x8xi32, #tpu.memory_space<vmem>>, vector<1x1x8xi32>,
    return
  }
  func.func @transform_0(%arg0: i32) -> (i32, i32) {
    %c0_i32 = arith.constant 0 : i32
    %c0_i32_0 = arith.constant 0 : i32
    return %arg0, %c0_i32 : i32, i32
  }
  func.func @transform_1(%arg0: i32) -> (i32, i32) {
    %c0_i32 = arith.constant 0 : i32
    %c0_i32_0 = arith.constant 0 : i32
    %c0_i32_1 = arith.constant 0 : i32
    return %c0_i32, %c0_i32_0 : i32, i32
  }
  func.func @transform_2(%arg0: i32) -> (i32, i32) {
    %c0_i32 = arith.constant 0 : i32
    %c0_i32_0 = arith.constant 0 : i32
    %c0_i32_1 = arith.constant 0 : i32
    return %c0_i32, %c0_i32_0 : i32, i32
  }
  func.func @transform_3(%arg0: i32) -> (i32, i32) {
    %c0_i32 = arith.constant 0 : i32
    %c0_i32_0 = arith.constant 0 : i32
    %c0_i32_1 = arith.constant 0 : i32
    return %c0_i32, %c0_i32_0 : i32, i32
  }
  func.func @transform_4(%arg0: i32) -> (i32, i32) {
    %c0_i32 = arith.constant 0 : i32
    %c0_i32_0 = arith.constant 0 : i32
    %c0_i32_1 = arith.constant 0 : i32
    return %c0_i32, %c0_i32_0 : i32, i32
  }
  func.func @transform_5(%arg0: i32) -> (i32, i32) {
    %c0_i32 = arith.constant 0 : i32
    %c0_i32_0 = arith.constant 0 : i32
    %c0_i32_1 = arith.constant 0 : i32
    return %c0_i32, %c0_i32_0 : i32, i32
  }
  func.func @transform_6(%arg0: i32) -> (i32, i32) {
    %c0_i32 = arith.constant 0 : i32
    %c0_i32_0 = arith.constant 0 : i32
    %c0_i32_1 = arith.constant 0 : i32
    return %c0_i32, %c0_i32_0 : i32, i32
  }
  func.func @transform_7(%arg0: i32) -> (i32, i32) {
    %c0_i32 = arith.constant 0 : i32
    %c0_i32_0 = arith.constant 0 : i32
    %c0_i32_1 = arith.constant 0 : i32
    return %c0_i32, %c0_i32_0 : i32, i32
  }
  func.func @transform_8(%arg0: i32) -> (i32, i32) {
    %c0_i32 = arith.constant 0 : i32
    %c0_i32_0 = arith.constant 0 : i32
    return %arg0, %c0_i32 : i32, i32
  }
  func.func @transform_9(%arg0: i32) -> (i32, i32, i32) {
    %c0_i32 = arith.constant 0 : i32
    %c0_i32_0 = arith.constant 0 : i32
    %c0_i32_1 = arith.constant 0 : i32
    return %arg0, %c0_i32, %c0_i32_0 : i32, i32, i32
  }
}

</mosaic_0001>

<llo_original>
// kernel: fsq_forward.1
$region0: #{fsq_forward.1}
  #allocation0 [shape = 'u32[]', space=smem, size = 0x4, offset = 0x4, fixed_abs, tag = 'smem constant byte address 0x4 - core index']
  #allocation1 [shape = 'u32[144,128]{1,0:T(1,128)}', space=vmem, size = 0x12000, scoped, tag = 'internal scratch']
  %s0 = inlined_call_operand.vmem [shape: f32[16,32], index: 0, kind: input, shape index: {}]
  %s1 = inlined_call_operand.vmem [shape: f32[32,128], index: 1, kind: input, shape index: {}]
  %s2 = inlined_call_operand.vmem [shape: f32[1,128], index: 2, kind: input, shape index: {}]
  %s3 = inlined_call_operand.vmem [shape: f32[128,32], index: 3, kind: input, shape index: {}]
  %s4 = inlined_call_operand.vmem [shape: f32[1,32], index: 4, kind: input, shape index: {}]
  %s5 = inlined_call_operand.vmem [shape: f32[1,128], index: 5, kind: input, shape index: {}]
  %s6 = inlined_call_operand.vmem [shape: f32[1,128], index: 6, kind: input, shape index: {}]
  %s7 = inlined_call_operand.vmem [shape: f32[1,128], index: 7, kind: input, shape index: {}]
  %s8 = inlined_call_operand.hbm [shape: f32[16,32], index: 8, kind: output, shape index: {0}]
  %s9 = inlined_call_operand.vmem [shape: s32[2,1,8], index: 9, kind: output, shape index: {1}]
  %10 = xla_tuple %s8, %s9
  %s11 = sld [smem:[#allocation0]]
  $region73: #{fsq_forward.1} parent=0
    _
  %s13 = ssub.s32 1, %s11
  %s14 = scalar_select 0, %s13, %s11
  $region1: #{fsq_forward.1} parent=0
    #allocation2 [shape = 'u8[8192]{0}', space=vmem, size = 0x2000, scoped, tag = 'output window, operand 0']
    #allocation3 [shape = 's32[2]{0}', space=sflag, size = 0x8, scoped, tag = 'scoped memory for fsq_forward.1']
    %15 = vsyncpa [#allocation3], 0
    %s16 = scalar_lea.sflag [#allocation3], 1
    %17 = vsyncpa %s16, 0
    loop: start=0, step=1, limit=4
    $region2: #{fsq_forward.1} parent=1 // loop_pre_header
      _
    $region3: #{fsq_forward.1} parent=1 // loop_header
      %s19 = sphi 0, %s23
      %p20 = scmp.ge.s32.totalorder %s19, 4
      %s29 = sphi 0, %s31
      %s32 = sphi 0, %s29
      %s33 = sphi 0, %s32
      %s49 = sphi 0, %s33
      %s53 = sphi 0, %s53
      %s55 = sphi 0, %s53
      %s56 = sphi 0, %s55
      %s70 = sphi 0, %s56
      %s74 = sphi 0, %s74
      %s76 = sphi 0, %s74
      %s77 = sphi 0, %s76
      %s91 = sphi 0, %s77
      %s95 = sphi 0, %s95
      %s97 = sphi 0, %s95
      %s98 = sphi 0, %s97
      %s112 = sphi 0, %s98
      %s116 = sphi 0, %s116
      %s118 = sphi 0, %s116
      %s119 = sphi 0, %s118
      %s133 = sphi 0, %s119
      %s137 = sphi 0, %s137
      %s139 = sphi 0, %s137
      %s140 = sphi 0, %s139
      %s154 = sphi 0, %s140
      %s158 = sphi 0, %s158
      %s160 = sphi 0, %s158
      %s161 = sphi 0, %s160
      %s175 = sphi 0, %s161
      %s179 = sphi 0, %s179
      %s181 = sphi 0, %s179
      %s182 = sphi 0, %s181
      %s196 = sphi 0, %s182
      %s202 = sphi 0, %s204
      %s205 = sphi 0, %s202
      %s206 = sphi 0, %s205
      %s222 = sphi 0, %s206
      %s228 = sphi 0, %s230
      %s231 = sphi 0, %s228
      %s232 = sphi 0, %s231
      %s248 = sphi 0, %s232
    $region4: #{fsq_forward.1} parent=1 // loop_header_branch
      %22 = sbr.rel (%p20) target = $region8
    $region5: #{fsq_forward.1} parent=1 // loop_body
      %s24 = ssub.s32 %s19, 1
      %s25 = ssub.s32 %s19, 2
      %s26 = sadd.s32 %s19, 1
      %s27 = ssub.s32 %s19, %s26
      %p28 = scmp.eq.s32.totalorder %s27, 0
      %s30 = sadd.s32 %s29, 1
      %s31 = scalar_select %p28, %s29, %s30
      %p34 = pneg %p28
      %p35 = scmp.eq.s32.totalorder %s19, 1
      %p36 = por %p34, %p35
      %p37 = scmp.ne.s32.totalorder %s29, %s32
      %p38 = scmp.eq.s32.totalorder %s19, 0
      %p39 = por %p37, %p38
      %p40 = scmp.ne.s32.totalorder %s29, %s32
      %p41 = scmp.eq.s32.totalorder %s24, 1
      %p42 = por %p40, %p41
      %p43 = scmp.ne.s32.totalorder %s32, %s33
      %p44 = scmp.eq.s32.totalorder %s24, 0
      %p45 = por %p43, %p44
      %p46 = scmp.ne.s32.totalorder %s32, %s33
      %p47 = scmp.eq.s32.totalorder %s25, 1
      %p48 = por %p46, %p47
      %p50 = scmp.ne.s32.totalorder %s33, %s49
      %p51 = scmp.eq.s32.totalorder %s25, 0
      %p52 = por %p50, %p51
      %s54 = sadd.s32 %s53, 1
      %p57 = scmp.eq.s32.totalorder %s19, 1
      %p58 = scmp.ne.s32.totalorder %s53, %s55
      %p59 = scmp.eq.s32.totalorder %s19, 0
      %p60 = por %p58, %p59
      %p61 = scmp.ne.s32.totalorder %s53, %s55
      %p62 = scmp.eq.s32.totalorder %s24, 1
      %p63 = por %p61, %p62
      %p64 = scmp.ne.s32.totalorder %s55, %s56
      %p65 = scmp.eq.s32.totalorder %s24, 0
      %p66 = por %p64, %p65
      %p67 = scmp.ne.s32.totalorder %s55, %s56
      %p68 = scmp.eq.s32.totalorder %s25, 1
      %p69 = por %p67, %p68
      %p71 = scmp.ne.s32.totalorder %s56, %s70
      %p72 = scmp.eq.s32.totalorder %s25, 0
      %p73 = por %p71, %p72
      %s75 = sadd.s32 %s74, 1
      %p78 = scmp.eq.s32.totalorder %s19, 1
      %p79 = scmp.ne.s32.totalorder %s74, %s76
      %p80 = scmp.eq.s32.totalorder %s19, 0
      %p81 = por %p79, %p80
      %p82 = scmp.ne.s32.totalorder %s74, %s76
      %p83 = scmp.eq.s32.totalorder %s24, 1
      %p84 = por %p82, %p83
      %p85 = scmp.ne.s32.totalorder %s76, %s77
      %p86 = scmp.eq.s32.totalorder %s24, 0
      %p87 = por %p85, %p86
      %p88 = scmp.ne.s32.totalorder %s76, %s77
      %p89 = scmp.eq.s32.totalorder %s25, 1
      %p90 = por %p88, %p89
      %p92 = scmp.ne.s32.totalorder %s77, %s91
      %p93 = scmp.eq.s32.totalorder %s25, 0
      %p94 = por %p92, %p93
      %s96 = sadd.s32 %s95, 1
      %p99 = scmp.eq.s32.totalorder %s19, 1
      %p100 = scmp.ne.s32.totalorder %s95, %s97
      %p101 = scmp.eq.s32.totalorder %s19, 0
      %p102 = por %p100, %p101
      %p103 = scmp.ne.s32.totalorder %s95, %s97
      %p104 = scmp.eq.s32.totalorder %s24, 1
      %p105 = por %p103, %p104
      %p106 = scmp.ne.s32.totalorder %s97, %s98
      %p107 = scmp.eq.s32.totalorder %s24, 0
      %p108 = por %p106, %p107
      %p109 = scmp.ne.s32.totalorder %s97, %s98
      %p110 = scmp.eq.s32.totalorder %s25, 1
      %p111 = por %p109, %p110
      %p113 = scmp.ne.s32.totalorder %s98, %s112
      %p114 = scmp.eq.s32.totalorder %s25, 0
      %p115 = por %p113, %p114
      %s117 = sadd.s32 %s116, 1
      %p120 = scmp.eq.s32.totalorder %s19, 1
      %p121 = scmp.ne.s32.totalorder %s116, %s118
      %p122 = scmp.eq.s32.totalorder %s19, 0
      %p123 = por %p121, %p122
      %p124 = scmp.ne.s32.totalorder %s116, %s118
      %p125 = scmp.eq.s32.totalorder %s24, 1
      %p126 = por %p124, %p125
      %p127 = scmp.ne.s32.totalorder %s118, %s119
      %p128 = scmp.eq.s32.totalorder %s24, 0
      %p129 = por %p127, %p128
      %p130 = scmp.ne.s32.totalorder %s118, %s119
      %p131 = scmp.eq.s32.totalorder %s25, 1
      %p132 = por %p130, %p131
      %p134 = scmp.ne.s32.totalorder %s119, %s133
      %p135 = scmp.eq.s32.totalorder %s25, 0
      %p136 = por %p134, %p135
      %s138 = sadd.s32 %s137, 1
      %p141 = scmp.eq.s32.totalorder %s19, 1
      %p142 = scmp.ne.s32.totalorder %s137, %s139
      %p143 = scmp.eq.s32.totalorder %s19, 0
      %p144 = por %p142, %p143
      %p145 = scmp.ne.s32.totalorder %s137, %s139
      %p146 = scmp.eq.s32.totalorder %s24, 1
      %p147 = por %p145, %p146
      %p148 = scmp.ne.s32.totalorder %s139, %s140
      %p149 = scmp.eq.s32.totalorder %s24, 0
      %p150 = por %p148, %p149
      %p151 = scmp.ne.s32.totalorder %s139, %s140
      %p152 = scmp.eq.s32.totalorder %s25, 1
      %p153 = por %p151, %p152
      %p155 = scmp.ne.s32.totalorder %s140, %s154
      %p156 = scmp.eq.s32.totalorder %s25, 0
      %p157 = por %p155, %p156
      %s159 = sadd.s32 %s158, 1
      %p162 = scmp.eq.s32.totalorder %s19, 1
      %p163 = scmp.ne.s32.totalorder %s158, %s160
      %p164 = scmp.eq.s32.totalorder %s19, 0
      %p165 = por %p163, %p164
      %p166 = scmp.ne.s32.totalorder %s158, %s160
      %p167 = scmp.eq.s32.totalorder %s24, 1
      %p168 = por %p166, %p167
      %p169 = scmp.ne.s32.totalorder %s160, %s161
      %p170 = scmp.eq.s32.totalorder %s24, 0
      %p171 = por %p169, %p170
      %p172 = scmp.ne.s32.totalorder %s160, %s161
      %p173 = scmp.eq.s32.totalorder %s25, 1
      %p174 = por %p172, %p173
      %p176 = scmp.ne.s32.totalorder %s161, %s175
      %p177 = scmp.eq.s32.totalorder %s25, 0
      %p178 = por %p176, %p177
      %s180 = sadd.s32 %s179, 1
      %p183 = scmp.eq.s32.totalorder %s19, 1
      %p184 = scmp.ne.s32.totalorder %s179, %s181
      %p185 = scmp.eq.s32.totalorder %s19, 0
      %p186 = por %p184, %p185
      %p187 = scmp.ne.s32.totalorder %s179, %s181
      %p188 = scmp.eq.s32.totalorder %s24, 1
      %p189 = por %p187, %p188
      %p190 = scmp.ne.s32.totalorder %s181, %s182
      %p191 = scmp.eq.s32.totalorder %s24, 0
      %p192 = por %p190, %p191
      %p193 = scmp.ne.s32.totalorder %s181, %s182
      %p194 = scmp.eq.s32.totalorder %s25, 1
      %p195 = por %p193, %p194
      %p197 = scmp.ne.s32.totalorder %s182, %s196
      %p198 = scmp.eq.s32.totalorder %s25, 0
      %p199 = por %p197, %p198
      %s200 = ssub.s32 %s19, %s26
      %p201 = scmp.eq.s32.totalorder %s200, 0
      %s203 = sadd.s32 %s202, 1
      %s204 = scalar_select %p201, %s202, %s203
      %p207 = pneg %p201
      %p208 = scmp.eq.s32.totalorder %s19, 1
      %p209 = por %p207, %p208
      %p210 = scmp.ne.s32.totalorder %s202, %s205
      %p211 = scmp.eq.s32.totalorder %s19, 0
      %p212 = por %p210, %p211
      %p213 = scmp.ne.s32.totalorder %s202, %s205
      %p214 = scmp.eq.s32.totalorder %s24, 1
      %p215 = por %p213, %p214
      %p216 = scmp.ne.s32.totalorder %s205, %s206
      %p217 = scmp.eq.s32.totalorder %s24, 0
      %p218 = por %p216, %p217
      %p219 = scmp.ne.s32.totalorder %s205, %s206
      %p220 = scmp.eq.s32.totalorder %s25, 1
      %p221 = por %p219, %p220
      %p223 = scmp.ne.s32.totalorder %s206, %s222
      %p224 = scmp.eq.s32.totalorder %s25, 0
      %p225 = por %p223, %p224
      %s226 = ssub.s32 %s19, %s26
      %p227 = scmp.eq.s32.totalorder %s226, 0
      %s229 = sadd.s32 %s228, 1
      %s230 = scalar_select %p227, %s228, %s229
      %p233 = pneg %p227
      %p234 = scmp.eq.s32.totalorder %s19, 1
      %p235 = por %p233, %p234
      %p236 = scmp.ne.s32.totalorder %s228, %s231
      %p237 = scmp.eq.s32.totalorder %s19, 0
      %p238 = por %p236, %p237
      %p239 = scmp.ne.s32.totalorder %s228, %s231
      %p240 = scmp.eq.s32.totalorder %s24, 1
      %p241 = por %p239, %p240
      %p242 = scmp.ne.s32.totalorder %s231, %s232
      %p243 = scmp.eq.s32.totalorder %s24, 0
      %p244 = por %p242, %p243
      %p245 = scmp.ne.s32.totalorder %s231, %s232
      %p246 = scmp.eq.s32.totalorder %s25, 1
      %p247 = por %p245, %p246
      %p249 = scmp.ne.s32.totalorder %s232, %s248
      %p250 = scmp.eq.s32.totalorder %s25, 0
      %p251 = por %p249, %p250
      %p252 = scmp.le.s32.totalorder 1, %s19
      %p253 = scmp.lt.s32.totalorder %s19, 3
      %p254 = pnand %p252, %p253
      %p255 = pneg %p254
      // Predicated region
      $region9: #{fsq_forward.1} parent=5 // pred_check
        _
      $region10: #{fsq_forward.1} parent=5 // pred_check_branch
        %257 = sbr.rel (%p254) target = $region12
      $region11: #{fsq_forward.1} parent=5 // pred_region
        %s258 = ssub.s32 %s19, 1
        // Predicated region
        $region13: #{fsq_forward.1} parent=11 // pred_check
          %p259 = pneg %p66
        $region14: #{fsq_forward.1} parent=11 // pred_check_branch
          %261 = sbr.rel (%p259) target = $region16
        $region15: #{fsq_forward.1} parent=11 // pred_region
          _
        $region16: #{fsq_forward.1} parent=11 // pred_fallthru
          _
        // Predicated region
        $region17: #{fsq_forward.1} parent=11 // pred_check
          %p262 = pneg %p87
        $region18: #{fsq_forward.1} parent=11 // pred_check_branch
          %264 = sbr.rel (%p262) target = $region20
        $region19: #{fsq_forward.1} parent=11 // pred_region
          _
        $region20: #{fsq_forward.1} parent=11 // pred_fallthru
          _
        // Predicated region
        $region21: #{fsq_forward.1} parent=11 // pred_check
          %p265 = pneg %p108
        $region22: #{fsq_forward.1} parent=11 // pred_check_branch
          %267 = sbr.rel (%p265) target = $region24
        $region23: #{fsq_forward.1} parent=11 // pred_region
          _
        $region24: #{fsq_forward.1} parent=11 // pred_fallthru
          _
        // Predicated region
        $region25: #{fsq_forward.1} parent=11 // pred_check
          %p268 = pneg %p129
        $region26: #{fsq_forward.1} parent=11 // pred_check_branch
          %270 = sbr.rel (%p268) target = $region28
        $region27: #{fsq_forward.1} parent=11 // pred_region
          _
        $region28: #{fsq_forward.1} parent=11 // pred_fallthru
          _
        // Predicated region
        $region29: #{fsq_forward.1} parent=11 // pred_check
          %p271 = pneg %p150
        $region30: #{fsq_forward.1} parent=11 // pred_check_branch
          %273 = sbr.rel (%p271) target = $region32
        $region31: #{fsq_forward.1} parent=11 // pred_region
          _
        $region32: #{fsq_forward.1} parent=11 // pred_fallthru
          _
        // Predicated region
        $region33: #{fsq_forward.1} parent=11 // pred_check
          %p274 = pneg %p171
        $region34: #{fsq_forward.1} parent=11 // pred_check_branch
          %276 = sbr.rel (%p274) target = $region36
        $region35: #{fsq_forward.1} parent=11 // pred_region
          _
        $region36: #{fsq_forward.1} parent=11 // pred_fallthru
          _
        // Predicated region
        $region37: #{fsq_forward.1} parent=11 // pred_check
          %p277 = pneg %p192
        $region38: #{fsq_forward.1} parent=11 // pred_check_branch
          %279 = sbr.rel (%p277) target = $region40
        $region39: #{fsq_forward.1} parent=11 // pred_region
          _
        $region40: #{fsq_forward.1} parent=11 // pred_fallthru
          _
      $region12: #{fsq_forward.1} parent=5 // pred_fallthru
        _
      %p280 = scmp.lt.s32.totalorder %s19, 2
      // Predicated region
      $region41: #{fsq_forward.1} parent=5 // pred_check
        %p281 = pneg %p280
      $region42: #{fsq_forward.1} parent=5 // pred_check_branch
        %283 = sbr.rel (%p281) target = $region44
      $region43: #{fsq_forward.1} parent=5 // pred_region
        // Predicated region
        $region45: #{fsq_forward.1} parent=43 // pred_check
          %p284 = pneg %p39
        $region46: #{fsq_forward.1} parent=43 // pred_check_branch
          %286 = sbr.rel (%p284) target = $region48
        $region47: #{fsq_forward.1} parent=43 // pred_region
          %p287 = scmp.lt.s32.totalorder %s19, 1
          %s288 = scalar_select %p287, %s19, 1
          %s289 = smul.addr %s288, 8
          %s290 = scalar_lea.vmem %s0, %s289
        $region48: #{fsq_forward.1} parent=43 // pred_fallthru
          _
      $region44: #{fsq_forward.1} parent=5 // pred_fallthru
        _
      %p291 = scmp.le.s32.totalorder 1, %s19
      %p292 = scmp.lt.s32.totalorder %s19, 3
      %p293 = pnand %p291, %p292
      %p294 = pneg %p293
      // Predicated region
      $region49: #{fsq_forward.1} parent=5 // pred_check
        _
      $region50: #{fsq_forward.1} parent=5 // pred_check_branch
        %296 = sbr.rel (%p293) target = $region52
      $region51: #{fsq_forward.1} parent=5 // pred_region
        %s297 = ssub.s32 %s19, 1
        %p298 = scmp.lt.s32.totalorder %s24, 1
        %s299 = scalar_select %p298, %s24, 1
        %s300 = smul.addr %s299, 8
        %s301 = scalar_lea.vmem %s0, %s300
        %p302 = pneg %p45
        %p303 = pneg %p42
        %p304 = pneg %p66
        %p305 = pneg %p63
        %p306 = pneg %p87
        %p307 = pneg %p84
        %p308 = pneg %p108
        %p309 = pneg %p105
        %p310 = pneg %p129
        %p311 = pneg %p126
        %p312 = pneg %p150
        %p313 = pneg %p147
        %p314 = pneg %p171
        %p315 = pneg %p168
        %p316 = pneg %p192
        %p317 = pneg %p189
        %p318 = pneg %p218
        %p319 = pneg %p215
        %s320 = sand.u32 %s205, 1
        %s321 = scalar_lea.sflag [#allocation3], %s320
        %s322 = sand.u32 %s205, 1
        %s323 = smul.addr %s322, 8
        %s324 = scalar_lea.vmem [#allocation2], %s323
        %p325 = pneg %p244
        %p326 = pneg %p241
        %p327 = scmp.lt.s32.totalorder %s24, 1
        %s328 = scalar_select %p327, %s24, 1
        %s329 = scalar_lea.vmem %s9, %s328
        %p330 = scmp.lt.s32.totalorder %s24, 1
        %s331 = scalar_select %p330, %s24, 1
        %s332 = smul.addr %s331, 8
        %s333 = scalar_lea.vmem %s0, %s332
        %p334 = scmp.lt.s32.totalorder %s24, 1
        %s335 = scalar_select %p334, %s24, 1
        %s336 = scalar_lea.vmem %s9, %s335
        %v337 = vld [vmem:[%s333] sm:$0xff]
        %v338 = vld [vmem:[%s1] sm:$0xff]
        %v339 = vld [vmem:[%s1 + $0x8] sm:$0xff]
        %v340 = vld [vmem:[%s1 + $0x10] sm:$0xff]
        %v341 = vld [vmem:[%s1 + $0x18] sm:$0xff]
        %v342 = vld [vmem:[%s2] sm:$0x1]
        %v344 = vlaneseq
        %v345 = vshrl.u32 %v344, 7
        %v346 = vsub.s32 0, %v345
        %v347 = vrot.slane %v342, %v346
        %vm349 = vcmask 261120
        %v351 = vsel %vm349, %v337, 0
        %353 = vmatprep.subr.mxu0 0.0
        %354 = vmatpush1.msra.mxu0 %v338
        %355 = vmatprep.subr.mxu0 0.0
        %356 = vmatpush1.msra.mxu0 %v339
        %357 = vmatprep.subr.mxu0 0.0
        %358 = vmatpush1.msra.mxu0 %v340
        %359 = vmatprep.subr.mxu0 0.0
        %360 = vmatpush1.msra.mxu0 %v341
        %361 = vmatprep.subr.mxu0 0.0
        %362 = vmatpush1.msra.mxu0 0.0
        %363 = vmatprep.subr.mxu0 0.0
        %364 = vmatpush1.msra.mxu0 0.0
        %365 = vmatprep.subr.mxu0 0.0
        %366 = vmatpush1.msra.mxu0 0.0
        %367 = vmatprep.subr.mxu0 0.0
        %368 = vmatpush1.msra.mxu0 0.0
        %369 = vmatprep.subr.mxu0 0.0
        %370 = vmatpush1.msra.mxu0 0.0
        %371 = vmatprep.subr.mxu0 0.0
        %372 = vmatpush1.msra.mxu0 0.0
        %373 = vmatprep.subr.mxu0 0.0
        %374 = vmatpush1.msra.mxu0 0.0
        %375 = vmatprep.subr.mxu0 0.0
        %376 = vmatpush1.msra.mxu0 0.0
        %377 = vmatprep.subr.mxu0 0.0
        %378 = vmatpush1.msra.mxu0 0.0
        %379 = vmatprep.subr.mxu0 0.0
        %380 = vmatpush1.msra.mxu0 0.0
        %381 = vmatprep.subr.mxu0 0.0
        %382 = vmatpush1.msra.mxu0 0.0
        %383 = vmatprep.subr.mxu0 0.0
        %384 = vmatpush1.msra.mxu0 0.0
        %385 = vmatprep.subr.mxu0 0.0
        %386 = vmatpush1.msra.mxu0 0.0
        %387 = vmatprep.subr.mxu0 0.0
        %388 = vmatpush1.msra.mxu0 0.0
        %389 = vmatprep.subr.mxu0 0.0
        %390 = vmatpush1.msra.mxu0 0.0
        %391 = vmatprep.subr.mxu0 0.0
        %392 = vmatpush1.msra.mxu0 0.0
        %393 = vmatprep.subr.mxu0 0.0
        %394 = vmatpush1.msra.mxu0 0.0
        %395 = vmatprep.subr.mxu0 0.0
        %396 = vmatpush1.msra.mxu0 0.0
        %397 = vmatprep.subr.mxu0 0.0
        %398 = vmatpush1.msra.mxu0 0.0
        %399 = vmatprep.subr.mxu0 0.0
        %400 = vmatpush1.msra.mxu0 0.0
        %401 = vmatprep.subr.mxu0 0.0
        %402 = vmatpush1.msra.mxu0 0.0
        %403 = vmatprep.subr.mxu0 0.0
        %404 = vmatpush1.msra.mxu0 0.0
        %405 = vmatprep.subr.mxu0 0.0
        %406 = vmatpush1.msra.mxu0 0.0
        %407 = vmatprep.subr.mxu0 0.0
        %408 = vmatpush1.msra.mxu0 0.0
        %409 = vmatprep.subr.mxu0 0.0
        %410 = vmatpush1.msra.mxu0 0.0
        %411 = vmatprep.subr.mxu0 0.0
        %412 = vmatpush1.msra.mxu0 0.0
        %413 = vmatprep.subr.mxu0 0.0
        %414 = vmatpush1.msra.mxu0 0.0
        %415 = vmatprep.subr.mxu0 0.0
        %416 = vmatpush1.msra.mxu0 0.0
        %417 = vmatprep.mubr.f32.mxu0 0.0
        %418 = vmatmul.mubr.f32.gmra.mrb[0].mxu0 %v351
        %v419 = vpop.f32.mrb[0].mxu0
        %v420 = vadd.f32 %v347, %v419
        %v421 = vpop.f32.mrb[0].mxu0
        %422 = vdwg.mxu0
        %v423 = vtanh.pop %v420
        %v424 = vld [vmem:[%s5] sm:$0x1]
        %v426 = vlaneseq
        %v427 = vshrl.u32 %v426, 7
        %v428 = vsub.s32 0, %v427
        %v429 = vrot.slane %v424, %v428
        %v431 = vmul.f32 %v423, %v429
        %v432 = vld [vmem:[%s6] sm:$0x1]
        %v434 = vlaneseq
        %v435 = vshrl.u32 %v434, 7
        %v436 = vsub.s32 0, %v435
        %v437 = vrot.slane %v432, %v436
        %v439 = vsub.f32 %v431, %v437
        %v440 = vround.ne.pseudo %v439
        %v441 = vld [vmem:[%s3] sm:$0xff]
        %v442 = vld [vmem:[%s3 + $0x8] sm:$0xff]
        %v443 = vld [vmem:[%s3 + $0x10] sm:$0xff]
        %v444 = vld [vmem:[%s3 + $0x18] sm:$0xff]
        %v445 = vld [vmem:[%s3 + $0x20] sm:$0xff]
        %v446 = vld [vmem:[%s3 + $0x28] sm:$0xff]
        %v447 = vld [vmem:[%s3 + $0x30] sm:$0xff]
        %v448 = vld [vmem:[%s3 + $0x38] sm:$0xff]
        %v449 = vld [vmem:[%s3 + $0x40] sm:$0xff]
        %v450 = vld [vmem:[%s3 + $0x48] sm:$0xff]
        %v451 = vld [vmem:[%s3 + $0x50] sm:$0xff]
        %v452 = vld [vmem:[%s3 + $0x58] sm:$0xff]
        %v453 = vld [vmem:[%s3 + $0x60] sm:$0xff]
        %v454 = vld [vmem:[%s3 + $0x68] sm:$0xff]
        %v455 = vld [vmem:[%s3 + $0x70] sm:$0xff]
        %v456 = vld [vmem:[%s3 + $0x78] sm:$0xff]
        %v457 = vld [vmem:[%s4] sm:$0x1]
        %v459 = vlaneseq
        %v460 = vshrl.u32 %v459, 7
        %v461 = vsub.s32 0, %v460
        %v462 = vrot.slane %v457, %v461
        %464 = vmatprep.subr.mxu0 0.0
        %465 = vmatpush1.msra.mxu0 %v441
        %466 = vmatprep.subr.mxu0 0.0
        %467 = vmatpush1.msra.mxu0 %v442
        %468 = vmatprep.subr.mxu0 0.0
        %469 = vmatpush1.msra.mxu0 %v443
        %470 = vmatprep.subr.mxu0 0.0
        %471 = vmatpush1.msra.mxu0 %v444
        %472 = vmatprep.subr.mxu0 0.0
        %473 = vmatpush1.msra.mxu0 %v445
        %474 = vmatprep.subr.mxu0 0.0
        %475 = vmatpush1.msra.mxu0 %v446
        %476 = vmatprep.subr.mxu0 0.0
        %477 = vmatpush1.msra.mxu0 %v447
        %478 = vmatprep.subr.mxu0 0.0
        %479 = vmatpush1.msra.mxu0 %v448
        %480 = vmatprep.subr.mxu0 0.0
        %481 = vmatpush1.msra.mxu0 %v449
        %482 = vmatprep.subr.mxu0 0.0
        %483 = vmatpush1.msra.mxu0 %v450
        %484 = vmatprep.subr.mxu0 0.0
        %485 = vmatpush1.msra.mxu0 %v451
        %486 = vmatprep.subr.mxu0 0.0
        %487 = vmatpush1.msra.mxu0 %v452
        %488 = vmatprep.subr.mxu0 0.0
        %489 = vmatpush1.msra.mxu0 %v453
        %490 = vmatprep.subr.mxu0 0.0
        %491 = vmatpush1.msra.mxu0 %v454
        %492 = vmatprep.subr.mxu0 0.0
        %493 = vmatpush1.msra.mxu0 %v455
        %494 = vmatprep.subr.mxu0 0.0
        %495 = vmatpush1.msra.mxu0 %v456
        %496 = vmatprep.subr.mxu0 0.0
        %497 = vmatpush1.msra.mxu0 0.0
        %498 = vmatprep.subr.mxu0 0.0
        %499 = vmatpush1.msra.mxu0 0.0
        %500 = vmatprep.subr.mxu0 0.0
        %501 = vmatpush1.msra.mxu0 0.0
        %502 = vmatprep.subr.mxu0 0.0
        %503 = vmatpush1.msra.mxu0 0.0
        %504 = vmatprep.subr.mxu0 0.0
        %505 = vmatpush1.msra.mxu0 0.0
        %506 = vmatprep.subr.mxu0 0.0
        %507 = vmatpush1.msra.mxu0 0.0
        %508 = vmatprep.subr.mxu0 0.0
        %509 = vmatpush1.msra.mxu0 0.0
        %510 = vmatprep.subr.mxu0 0.0
        %511 = vmatpush1.msra.mxu0 0.0
        %512 = vmatprep.subr.mxu0 0.0
        %513 = vmatpush1.msra.mxu0 0.0
        %514 = vmatprep.subr.mxu0 0.0
        %515 = vmatpush1.msra.mxu0 0.0
        %516 = vmatprep.subr.mxu0 0.0
        %517 = vmatpush1.msra.mxu0 0.0
        %518 = vmatprep.subr.mxu0 0.0
        %519 = vmatpush1.msra.mxu0 0.0
        %520 = vmatprep.subr.mxu0 0.0
        %521 = vmatpush1.msra.mxu0 0.0
        %522 = vmatprep.subr.mxu0 0.0
        %523 = vmatpush1.msra.mxu0 0.0
        %524 = vmatprep.subr.mxu0 0.0
        %525 = vmatpush1.msra.mxu0 0.0
        %526 = vmatprep.subr.mxu0 0.0
        %527 = vmatpush1.msra.mxu0 0.0
        %528 = vmatprep.mubr.f32.mxu0 0.0
        %529 = vmatmul.mubr.f32.gmra.mrb[0].mxu0 %v440
        %v530 = vpop.f32.mrb[0].mxu0
        %v531 = vadd.f32 %v462, %v530
        %v532 = vpop.f32.mrb[0].mxu0
        %533 = vdwg.mxu0
        %534 = vst.msk [vmem:[%s324] sm:$0xff] %vm349, %v531
        %v535 = vld [vmem:[%s7] sm:$0x1]
        %536 = vmatprep.subr.mxu0 0.0
        %537 = vmatpush1.xpose.msra.mxu0 %v440
        %538 = vmatprep.subr.mxu0 0.0
        %539 = vmatpush1.xpose.msra.mxu0 0.0
        %540 = vmatprep.subr.mxu0 0.0
        %541 = vmatpush1.xpose.msra.mxu0 0.0
        %542 = vmatprep.subr.mxu0 0.0
        %543 = vmatpush1.xpose.msra.mxu0 0.0
        %544 = vmatprep.subr.mxu0 0.0
        %545 = vmatpush1.xpose.msra.mxu0 0.0
        %546 = vmatprep.subr.mxu0 0.0
        %547 = vmatpush1.xpose.msra.mxu0 0.0
        %548 = vmatprep.subr.mxu0 0.0
        %549 = vmatpush1.xpose.msra.mxu0 0.0
        %550 = vmatprep.subr.mxu0 0.0
        %551 = vmatpush1.xpose.msra.mxu0 0.0
        %552 = vmatprep.subr.mxu0 0.0
        %553 = vmatpush1.xpose.msra.mxu0 0.0
        %554 = vmatprep.subr.mxu0 0.0
        %555 = vmatpush1.xpose.msra.mxu0 0.0
        %556 = vmatprep.subr.mxu0 0.0
        %557 = vmatpush1.xpose.msra.mxu0 0.0
        %558 = vmatprep.subr.mxu0 0.0
        %559 = vmatpush1.xpose.msra.mxu0 0.0
        %560 = vmatprep.subr.mxu0 0.0
        %561 = vmatpush1.xpose.msra.mxu0 0.0
        %562 = vmatprep.subr.mxu0 0.0
        %563 = vmatpush1.xpose.msra.mxu0 0.0
        %564 = vmatprep.subr.mxu0 0.0
        %565 = vmatpush1.xpose.msra.mxu0 0.0
        %566 = vmatprep.subr.mxu0 0.0
        %567 = vmatpush1.xpose.msra.mxu0 0.0
        %568 = vmatprep.subr.mxu0 0.0
        %569 = vmatpush1.xpose.msra.mxu0 0.0
        %570 = vmatprep.subr.mxu0 0.0
        %571 = vmatpush1.xpose.msra.mxu0 0.0
        %572 = vmatprep.subr.mxu0 0.0
        %573 = vmatpush1.xpose.msra.mxu0 0.0
        %574 = vmatprep.subr.mxu0 0.0
        %575 = vmatpush1.xpose.msra.mxu0 0.0
        %576 = vmatprep.subr.mxu0 0.0
        %577 = vmatpush1.xpose.msra.mxu0 0.0
        %578 = vmatprep.subr.mxu0 0.0
        %579 = vmatpush1.xpose.msra.mxu0 0.0
        %580 = vmatprep.subr.mxu0 0.0
        %581 = vmatpush1.xpose.msra.mxu0 0.0
        %582 = vmatprep.subr.mxu0 0.0
        %583 = vmatpush1.xpose.msra.mxu0 0.0
        %584 = vmatprep.subr.mxu0 0.0
        %585 = vmatpush1.xpose.msra.mxu0 0.0
        %586 = vmatprep.subr.mxu0 0.0
        %587 = vmatpush1.xpose.msra.mxu0 0.0
        %588 = vmatprep.subr.mxu0 0.0
        %589 = vmatpush1.xpose.msra.mxu0 0.0
        %590 = vmatprep.subr.mxu0 0.0
        %591 = vmatpush1.xpose.msra.mxu0 0.0
        %592 = vmatprep.subr.mxu0 0.0
        %593 = vmatpush1.xpose.msra.mxu0 0.0
        %594 = vmatprep.subr.mxu0 0.0
        %595 = vmatpush1.xpose.msra.mxu0 0.0
        %596 = vmatprep.subr.mxu0 0.0
        %597 = vmatpush1.xpose.msra.mxu0 0.0
        %598 = vmatprep.subr.mxu0 0.0
        %599 = vmatpush1.xpose.msra.mxu0 0.0
        %600 = vmatprep.mubr.f32.mxu0 0.0
        %601 = vmatmul.mubr.f32.gmra.mrb[0].mxu0 %v535
        %v602 = vpop.f32.mrb[0].mxu0
        %v603 = vadd.f32 7972.0, %v602
        %v604 = vpop.f32.mrb[0].mxu0
        %605 = vdwg.mxu0
        %v606 = vcvt.f32.s32.ties.to.even %v603
        %vm607 = vcmask 57344
        %608 = vst.msk [vmem:[%s336] sm:$0x1] %vm607, %v606
        %s609 = sand.u32 %s205, 1
        %s610 = scalar_lea.sflag [#allocation3], %s609
        %s611 = sand.u32 %s205, 1
        %s612 = smul.addr %s611, 8
        %s613 = scalar_lea.vmem [#allocation2], %s612
        %p614 = scmp.lt.s32.totalorder %s24, 1
        %s615 = scalar_select %p614, %s24, 1
        %s616 = scalar_lea.vmem %s9, %s615
        // Predicated region
        $region53: #{fsq_forward.1} parent=51 // pred_check
          %p617 = pneg %p215
        $region54: #{fsq_forward.1} parent=51 // pred_check_branch
          %619 = sbr.rel (%p617) target = $region56
        $region55: #{fsq_forward.1} parent=51 // pred_region
          %s621 = ssub.s32 128, 128
          %622 = vsyncadd %s610, %s621
          %s623 = smul.addr %s24, 128
          %s624 = scalar_lea.hbm %s8, %s623
          %s626 = sshll.u32 %s613, 4
          %s627 = int_to_ptr.vmem [resolvable:$true] %s626
          %629 = dma.vmem_to_hbm [thread:$0]  %s627, 128, %s624, %s610
        $region56: #{fsq_forward.1} parent=51 // pred_fallthru
          _
        // Predicated region
        $region57: #{fsq_forward.1} parent=51 // pred_check
          %p630 = pneg %p241
        $region58: #{fsq_forward.1} parent=51 // pred_check_branch
          %632 = sbr.rel (%p630) target = $region60
        $region59: #{fsq_forward.1} parent=51 // pred_region
          _
        $region60: #{fsq_forward.1} parent=51 // pred_fallthru
          _
      $region52: #{fsq_forward.1} parent=5 // pred_fallthru
        _
      %p633 = scmp.le.s32.totalorder 2, %s19
      // Predicated region
      $region61: #{fsq_forward.1} parent=5 // pred_check
        %p634 = pneg %p633
      $region62: #{fsq_forward.1} parent=5 // pred_check_branch
        %636 = sbr.rel (%p634) target = $region64
      $region63: #{fsq_forward.1} parent=5 // pred_region
        %s637 = ssub.s32 %s19, 2
        // Predicated region
        $region65: #{fsq_forward.1} parent=63 // pred_check
          %p638 = pneg %p221
        $region66: #{fsq_forward.1} parent=63 // pred_check_branch
          %640 = sbr.rel (%p638) target = $region68
        $region67: #{fsq_forward.1} parent=63 // pred_region
          %s641 = sand.u32 %s206, 1
          %s642 = scalar_lea.sflag [#allocation3], %s641
          %s643 = sand.u32 %s206, 1
          %s644 = smul.addr %s643, 8
          %s645 = scalar_lea.vmem [#allocation2], %s644
          %646 = dma.done %s642, 128
        $region68: #{fsq_forward.1} parent=63 // pred_fallthru
          _
        // Predicated region
        $region69: #{fsq_forward.1} parent=63 // pred_check
          %p647 = pneg %p247
        $region70: #{fsq_forward.1} parent=63 // pred_check_branch
          %649 = sbr.rel (%p647) target = $region72
        $region71: #{fsq_forward.1} parent=63 // pred_region
          %p650 = scmp.lt.s32.totalorder %s25, 1
          %s651 = scalar_select %p650, %s25, 1
          %s652 = scalar_lea.vmem %s9, %s651
        $region72: #{fsq_forward.1} parent=63 // pred_fallthru
          _
      $region64: #{fsq_forward.1} parent=5 // pred_fallthru
        _
    $region6: #{fsq_forward.1} parent=1 // loop_footer
      %s23 = sadd.s32 1, %s19
    $region7: #{fsq_forward.1} parent=1 // loop_footer_branch
      %18 = sbr.rel target = $region3
    $region8: #{fsq_forward.1} parent=1 // loop_exit
      _
    %653 = vsyncpa [#allocation3], 1
    %s654 = scalar_lea.sflag [#allocation3], 1
    %655 = vsyncpa %s654, 1

</llo_original>
